<compile_context>
chip_gen: v5e
topology: v5e:2x2
jax: 0.10.0
libtpu: 0.0.40
codegen_flags: <defaults>
</compile_context>

<pallas_src>
import jax
import jax.numpy as jnp
from jax.experimental import pallas as pl
from jax.experimental.pallas import tpu as pltpu

# ----------------------------- configuration --------------------------------
NUM_CLASS = 20
NUM_CLIP = 16            # must be 16 to match new_fc = Linear(16*out_dim, ...)
OUT_DIM = 64             # stands in for TRUNCATE_DIM[base_model]
DIM_EMBED = 128
BATCH = 2
H = W = 4
LANE = 128


# ------------------------------ Pallas kernel --------------------------------
def cat_head_kernel(x_ref, w1_ref, b1_ref, w2_ref, b2_ref,
                    embed_ref, logits_ref):
    # x_ref: (B, K) bf16 pooled features, lane-dense in K = num_clip*C.
    # new_fc: bf16 MXU operands, f32 accumulation + f32 bias.
    embed = jnp.dot(x_ref[...], w1_ref[...],
                    preferred_element_type=jnp.float32) + b1_ref[...]   # (B, E)
    embed_ref[...] = embed.astype(embed_ref.dtype)

    # dropout(p=0) is the identity; use_CosFace=False -> plain fc.
    # fc weights are lane-padded to a multiple of 128 columns (unmasked vst);
    # embed stays f32 into this tiny GEMM to avoid a second round of rounding.
    logits = jnp.dot(embed, w2_ref[...],
                     preferred_element_type=jnp.float32) + b2_ref[...]  # (B, NCpad)
    logits_ref[...] = logits.astype(logits_ref.dtype)


# ------------------------- one-time parameter packing ------------------------
def pack_cat_params(params):
    """Hoist all constant weight preprocessing out of the per-call path."""
    e, k = params["new_fc_w"].shape          # (dim_embedding, num_clip*out_dim)
    nc = params["fc_w"].shape[0]
    nc_pad = max(LANE, ((nc + LANE - 1) // LANE) * LANE)
    return {
        "w1t": params["new_fc_w"].T.astype(jnp.bfloat16),                 # (K, E)
        "b1": params["new_fc_b"][None, :].astype(jnp.float32),            # (1, E)
        "w2t": jnp.pad(params["fc_w"].T.astype(jnp.float32),
                       ((0, 0), (0, nc_pad - nc))),                       # (E, NCpad)
        "b2": jnp.pad(params["fc_b"][None, :].astype(jnp.float32),
                      ((0, 0), (0, nc_pad - nc))),                        # (1, NCpad)
        "k_in": k, "dim_embed": e, "num_class": nc, "nc_pad": nc_pad,
    }


# -------------------------------- wrapper ------------------------------------
def cat_forward(x_nchw, packed, *, num_clip=NUM_CLIP, return_padded_logits=False):
    """x_nchw: backbone features (B*num_clip, C, H, W), NCHW like PyTorch.

    Returns (logits, seq_features, embed_feature) matching CAT.forward.
    """
    assert num_clip == 16, "new_fc = Linear(16*out_dim, ...) requires num_clip == 16"
    n, c, h, w = x_nchw.shape
    b = n // num_clip
    k = num_clip * c
    assert k == packed["k_in"]
    e = packed["dim_embed"]
    nc_pad = packed["nc_pad"]

    # AdaptiveAvgPool2d((1,1)) + flatten(1) + reshape(-1, num_clip*out_dim).
    # Pooling is done here (f32 accumulation) so the reshape is contiguous
    # (no HBM transpose) and the kernel's MXU LHS is only (B, K).
    pooled = jnp.mean(x_nchw.astype(jnp.float32), axis=(2, 3))        # (N, C)
    feat = pooled.reshape(b, k).astype(jnp.bfloat16)                  # (B, K)

    cost = pl.CostEstimate(
        flops=2 * b * k * e + 2 * b * e * nc_pad,
        transcendentals=0,
        bytes_accessed=(b * k * 2 + k * e * 2 + e * 4
                        + e * nc_pad * 4 + nc_pad * 4
                        + b * e * 4 + b * nc_pad * 4),
    )

    embed, logits_pad = pl.pallas_call(
        cat_head_kernel,
        out_shape=(jax.ShapeDtypeStruct((b, e), jnp.float32),
                   jax.ShapeDtypeStruct((b, nc_pad), jnp.float32)),
        in_specs=[pl.BlockSpec(memory_space=pltpu.MemorySpace.VMEM)] * 5,
        out_specs=(pl.BlockSpec(memory_space=pltpu.MemorySpace.VMEM),
                   pl.BlockSpec(memory_space=pltpu.MemorySpace.VMEM)),
        cost_estimate=cost,
    )(feat, packed["w1t"], packed["b1"], packed["w2t"], packed["b2"])

    seq_features = None
    if return_padded_logits:
        # Consumers that mask in the loss/argmax can take the 128-wide logits
        # directly and skip the per-call slice.
        return logits_pad, seq_features, embed
    return logits_pad[:, :packed["num_class"]], seq_features, embed


# ---------------------------- pure-JAX reference -----------------------------
def cat_forward_ref(x_nchw, params, *, num_clip=NUM_CLIP):
    n, c, _, _ = x_nchw.shape
    b = n // num_clip
    pooled = jnp.mean(x_nchw.astype(jnp.float32), axis=(2, 3))    # (N, C)
    feat = pooled.reshape(b, num_clip * c)
    embed = feat @ params["new_fc_w"].T + params["new_fc_b"]
    logits = embed @ params["fc_w"].T + params["fc_b"]
    return logits, None, embed


# ---------------------------------- main --------------------------------------
if __name__ == "__main__":
    key = jax.random.PRNGKey(0)
    kx, k1, k2, k3, k4 = jax.random.split(key, 5)

    # backbone feature maps (NCHW), B*num_clip items
    x = jax.random.normal(kx, (BATCH * NUM_CLIP, OUT_DIM, H, W), jnp.float32)

    k_in = NUM_CLIP * OUT_DIM   # == 16 * out_dim, the new_fc input size
    params = {
        "new_fc_w": 0.02 * jax.random.normal(k1, (DIM_EMBED, k_in), jnp.float32),
        "new_fc_b": 0.01 * jax.random.normal(k2, (DIM_EMBED,), jnp.float32),
        "fc_w": 0.02 * jax.random.normal(k3, (NUM_CLASS, DIM_EMBED), jnp.float32),
        "fc_b": 0.01 * jax.random.normal(k4, (NUM_CLASS,), jnp.float32),
    }

    # One-time packing (outside the per-call / jit path).
    packed = jax.tree_util.tree_map(
        lambda v: jax.block_until_ready(v) if isinstance(v, jax.Array) else v,
        pack_cat_params(params))

    fwd = jax.jit(lambda xx: cat_forward(xx, packed))
    logits, seq_features, embed = jax.block_until_ready(fwd(x))

    ref_logits, _, ref_embed = cat_forward_ref(x, params)

    assert logits.shape == (BATCH, NUM_CLASS)
    assert embed.shape == (BATCH, DIM_EMBED)
    assert seq_features is None
    # bf16 operands on the first GEMM (f32 accumulation) -> bf16-sized tolerance.
    assert jnp.allclose(logits, ref_logits, atol=1e-2, rtol=1e-2)
    assert jnp.allclose(embed, ref_embed, atol=1e-2, rtol=1e-2)

    print("KERNEL_OK")
</pallas_src>

<mosaic_0001>
module attributes {stable_mosaic.version = 11 : i64} {
  func.func @cat_head_kernel(%arg0: memref<2x1024xbf16, #tpu.memory_space<vmem>>, %arg1: memref<1024x128xbf16, #tpu.memory_space<vmem>>, %arg2: memref<1x128xf32, #tpu.memory_space<vmem>>, %arg3: memref<128x128xf32, #tpu.memory_space<vmem>>, %arg4: memref<1x128xf32, #tpu.memory_space<vmem>>, %arg5: memref<2x128xf32, #tpu.memory_space<vmem>>, %arg6: memref<2x128xf32, #tpu.memory_space<vmem>>) attributes {dimension_semantics = [], scalar_prefetch = 0 : i64, scratch_operands = 0 : i64, tpu.core_type = #tpu.core_type<tc>} {
    %c0 = arith.constant 0 : index
    %c0_0 = arith.constant 0 : index
    %0 = vector.load %arg0[%c0, %c0_0] : memref<2x1024xbf16, #tpu.memory_space<vmem>>, vector<2x1024xbf16>
    %c0_1 = arith.constant 0 : index
    %c0_2 = arith.constant 0 : index
    %1 = vector.load %arg1[%c0_1, %c0_2] : memref<1024x128xbf16, #tpu.memory_space<vmem>>, vector<1024x128xbf16>
    %cst = arith.constant dense<0.000000e+00> : vector<2x128xf32>
    %2 = tpu.matmul %0, %1, %cst {dimension_numbers = #tpu.dot_dimension_numbers<[1], [0], [0], [1], [0, 0, 1, 1], [], []>} : vector<2x1024xbf16>, vector<1024x128xbf16>, vector<2x128xf32> -> vector<2x128xf32>
    %c0_3 = arith.constant 0 : index
    %c0_4 = arith.constant 0 : index
    %3 = vector.load %arg2[%c0_3, %c0_4] : memref<1x128xf32, #tpu.memory_space<vmem>>, vector<1x128xf32>
    %4 = vector.broadcast %3 : vector<1x128xf32> to vector<2x128xf32>
    %5 = arith.addf %2, %4 : vector<2x128xf32>
    %c0_5 = arith.constant 0 : index
    %c0_6 = arith.constant 0 : index
    %6 = vector.load %arg5[%c0_5, %c0_6] : memref<2x128xf32, #tpu.memory_space<vmem>>, vector<2x128xf32>
    tpu.vector_store %arg5[%c0_5, %c0_6], %5 {strides = array<i32>} : memref<2x128xf32, #tpu.memory_space<vmem>>, vector<2x128xf32>,
    %c0_7 = arith.constant 0 : index
    %c0_8 = arith.constant 0 : index
    %7 = vector.load %arg3[%c0_7, %c0_8] : memref<128x128xf32, #tpu.memory_space<vmem>>, vector<128x128xf32>
    %cst_9 = arith.constant dense<0.000000e+00> : vector<2x128xf32>
    %8 = tpu.matmul %5, %7, %cst_9 {dimension_numbers = #tpu.dot_dimension_numbers<[1], [0], [0], [1], [0, 0, 1, 1], [], []>} : vector<2x128xf32>, vector<128x128xf32>, vector<2x128xf32> -> vector<2x128xf32>
    %c0_10 = arith.constant 0 : index
    %c0_11 = arith.constant 0 : index
    %9 = vector.load %arg4[%c0_10, %c0_11] : memref<1x128xf32, #tpu.memory_space<vmem>>, vector<1x128xf32>
    %10 = vector.broadcast %9 : vector<1x128xf32> to vector<2x128xf32>
    %11 = arith.addf %8, %10 : vector<2x128xf32>
    %c0_12 = arith.constant 0 : index
    %c0_13 = arith.constant 0 : index
    %12 = vector.load %arg6[%c0_12, %c0_13] : memref<2x128xf32, #tpu.memory_space<vmem>>, vector<2x128xf32>
    tpu.vector_store %arg6[%c0_12, %c0_13], %11 {strides = array<i32>} : memref<2x128xf32, #tpu.memory_space<vmem>>, vector<2x128xf32>,
    return
  }
}

</mosaic_0001>

<llo_original>
// kernel: _lambda_.1
$region0: #{_lambda_.1}
  #allocation0 [shape = 'u32[]', space=smem, size = 0x4, offset = 0x4, fixed_abs, tag = 'smem constant byte address 0x4 - core index']
  #allocation1 [shape = 'u32[72,128]{1,0:T(1,128)}', space=vmem, size = 0x9000, scoped, tag = 'internal scratch']
  %s0 = inlined_call_operand.vmem [shape: bf16[2,1024], index: 0, kind: input, shape index: {}]
  %s1 = inlined_call_operand.vmem [shape: bf16[1024,128], index: 1, kind: input, shape index: {}]
  %s2 = inlined_call_operand.vmem [shape: f32[1,128], index: 2, kind: input, shape index: {}]
  %s3 = inlined_call_operand.hbm [shape: f32[128,128], index: 3, kind: input, shape index: {}]
  %s4 = inlined_call_operand.vmem [shape: f32[1,128], index: 4, kind: input, shape index: {}]
  %s5 = inlined_call_operand.hbm [shape: f32[2,128], index: 5, kind: output, shape index: {0}]
  %s6 = inlined_call_operand.hbm [shape: f32[2,128], index: 6, kind: output, shape index: {1}]
  %7 = xla_tuple %s5, %s6
  %s8 = sld [smem:[#allocation0]]
  $region42: #{_lambda_.1} parent=0
    _
  %s10 = ssub.s32 1, %s8
  %s11 = scalar_select 0, %s10, %s8
  $region1: #{_lambda_.1} parent=0
    #allocation2 [shape = 'u8[65536]{0}', space=vmem, size = 0x10000, scoped, tag = 'input window, operand 3, single buffered']
    #allocation3 [shape = 's32[1]{0}', space=sflag, size = 0x4, scoped, tag = 'scoped memory for _lambda_.1']
    #allocation4 [shape = 's32[1]{0}', space=sflag, size = 0x4, scoped, tag = 'scoped memory for _lambda_.1']
    #allocation5 [shape = 'u8[1024]{0}', space=vmem, size = 0x400, scoped, tag = 'output window, operand 0, single buffered']
    #allocation6 [shape = 'u8[1024]{0}', space=vmem, size = 0x400, scoped, tag = 'output window, operand 1, single buffered']
    #allocation7 [shape = 's32[1]{0}', space=sflag, size = 0x4, scoped, tag = 'scoped memory for _lambda_.1']
    %12 = vsyncpa [#allocation3], 0
    %13 = vsyncpa [#allocation4], 0
    %14 = vsyncpa [#allocation7], 0
    // Predicated region
    $region2: #{_lambda_.1} parent=1 // pred_check
      _
    $region3: #{_lambda_.1} parent=1 // pred_check_branch
      %16 = sbr.rel (0) target = $region5
    $region4: #{_lambda_.1} parent=1 // pred_region
      _
    $region5: #{_lambda_.1} parent=1 // pred_fallthru
      _
    // Predicated region
    $region6: #{_lambda_.1} parent=1 // pred_check
      _
    $region7: #{_lambda_.1} parent=1 // pred_check_branch
      %18 = sbr.rel (0) target = $region9
    $region8: #{_lambda_.1} parent=1 // pred_region
      _
    $region9: #{_lambda_.1} parent=1 // pred_fallthru
      _
    // Predicated region
    $region10: #{_lambda_.1} parent=1 // pred_check
      _
    $region11: #{_lambda_.1} parent=1 // pred_check_branch
      %20 = sbr.rel (0) target = $region13
    $region12: #{_lambda_.1} parent=1 // pred_region
      _
    $region13: #{_lambda_.1} parent=1 // pred_fallthru
      _
    // Predicated region
    $region14: #{_lambda_.1} parent=1 // pred_check
      _
    $region15: #{_lambda_.1} parent=1 // pred_check_branch
      %22 = sbr.rel (0) target = $region17
    $region16: #{_lambda_.1} parent=1 // pred_region
      %24 = vsyncadd [#allocation3], 0
      %s25 = sshll.u32 %s3, 4
      %s26 = int_to_ptr.hbm [resolvable:$true] %s25
      %s27 = sshll.u32 [#allocation2], 4
      %s28 = int_to_ptr.vmem [resolvable:$true] %s27
      %33 = dma.hbm_to_vmem [thread:$0]  %s26, 2048, %s28, [#allocation3], 128, 128, 8
    $region17: #{_lambda_.1} parent=1 // pred_fallthru
      _
    // Predicated region
    $region18: #{_lambda_.1} parent=1 // pred_check
      _
    $region19: #{_lambda_.1} parent=1 // pred_check_branch
      %35 = sbr.rel (0) target = $region21
    $region20: #{_lambda_.1} parent=1 // pred_region
      _
    $region21: #{_lambda_.1} parent=1 // pred_fallthru
      _
    // Predicated region
    $region22: #{_lambda_.1} parent=1 // pred_check
      _
    $region23: #{_lambda_.1} parent=1 // pred_check_branch
      %37 = sbr.rel (0) target = $region25
    $region24: #{_lambda_.1} parent=1 // pred_region
      %39 = dma.done [#allocation3], 2048
    $region25: #{_lambda_.1} parent=1 // pred_fallthru
      _
    %v40 = vld [vmem:[%s0] sm:$0xff]
    %v41 = vld [vmem:[%s1] sm:$0xf]
    %v42 = vld [vmem:[%s1 + $0x4] sm:$0xf]
    %v43 = vld [vmem:[%s1 + $0x8] sm:$0xf]
    %v44 = vld [vmem:[%s1 + $0xc] sm:$0xf]
    %v45 = vld [vmem:[%s1 + $0x10] sm:$0xf]
    %v46 = vld [vmem:[%s1 + $0x14] sm:$0xf]
    %v47 = vld [vmem:[%s1 + $0x18] sm:$0xf]
    %v48 = vld [vmem:[%s1 + $0x1c] sm:$0xf]
    %v49 = vld [vmem:[%s1 + $0x20] sm:$0xf]
    %v50 = vld [vmem:[%s1 + $0x24] sm:$0xf]
    %v51 = vld [vmem:[%s1 + $0x28] sm:$0xf]
    %v52 = vld [vmem:[%s1 + $0x2c] sm:$0xf]
    %v53 = vld [vmem:[%s1 + $0x30] sm:$0xf]
    %v54 = vld [vmem:[%s1 + $0x34] sm:$0xf]
    %v55 = vld [vmem:[%s1 + $0x38] sm:$0xf]
    %v56 = vld [vmem:[%s1 + $0x3c] sm:$0xf]
    %v57 = vld [vmem:[%s1 + $0x40] sm:$0xf]
    %v58 = vld [vmem:[%s1 + $0x44] sm:$0xf]
    %v59 = vld [vmem:[%s1 + $0x48] sm:$0xf]
    %v60 = vld [vmem:[%s1 + $0x4c] sm:$0xf]
    %v61 = vld [vmem:[%s1 + $0x50] sm:$0xf]
    %v62 = vld [vmem:[%s1 + $0x54] sm:$0xf]
    %v63 = vld [vmem:[%s1 + $0x58] sm:$0xf]
    %v64 = vld [vmem:[%s1 + $0x5c] sm:$0xf]
    %v65 = vld [vmem:[%s1 + $0x60] sm:$0xf]
    %v66 = vld [vmem:[%s1 + $0x64] sm:$0xf]
    %v67 = vld [vmem:[%s1 + $0x68] sm:$0xf]
    %v68 = vld [vmem:[%s1 + $0x6c] sm:$0xf]
    %v69 = vld [vmem:[%s1 + $0x70] sm:$0xf]
    %v70 = vld [vmem:[%s1 + $0x74] sm:$0xf]
    %v71 = vld [vmem:[%s1 + $0x78] sm:$0xf]
    %v72 = vld [vmem:[%s1 + $0x7c] sm:$0xf]
    %v73 = vld [vmem:[%s1 + $0x80] sm:$0xf]
    %v74 = vld [vmem:[%s1 + $0x84] sm:$0xf]
    %v75 = vld [vmem:[%s1 + $0x88] sm:$0xf]
    %v76 = vld [vmem:[%s1 + $0x8c] sm:$0xf]
    %v77 = vld [vmem:[%s1 + $0x90] sm:$0xf]
    %v78 = vld [vmem:[%s1 + $0x94] sm:$0xf]
    %v79 = vld [vmem:[%s1 + $0x98] sm:$0xf]
    %v80 = vld [vmem:[%s1 + $0x9c] sm:$0xf]
    %v81 = vld [vmem:[%s1 + $0xa0] sm:$0xf]
    %v82 = vld [vmem:[%s1 + $0xa4] sm:$0xf]
    %v83 = vld [vmem:[%s1 + $0xa8] sm:$0xf]
    %v84 = vld [vmem:[%s1 + $0xac] sm:$0xf]
    %v85 = vld [vmem:[%s1 + $0xb0] sm:$0xf]
    %v86 = vld [vmem:[%s1 + $0xb4] sm:$0xf]
    %v87 = vld [vmem:[%s1 + $0xb8] sm:$0xf]
    %v88 = vld [vmem:[%s1 + $0xbc] sm:$0xf]
    %v89 = vld [vmem:[%s1 + $0xc0] sm:$0xf]
    %v90 = vld [vmem:[%s1 + $0xc4] sm:$0xf]
    %v91 = vld [vmem:[%s1 + $0xc8] sm:$0xf]
    %v92 = vld [vmem:[%s1 + $0xcc] sm:$0xf]
    %v93 = vld [vmem:[%s1 + $0xd0] sm:$0xf]
    %v94 = vld [vmem:[%s1 + $0xd4] sm:$0xf]
    %v95 = vld [vmem:[%s1 + $0xd8] sm:$0xf]
    %v96 = vld [vmem:[%s1 + $0xdc] sm:$0xf]
    %v97 = vld [vmem:[%s1 + $0xe0] sm:$0xf]
    %v98 = vld [vmem:[%s1 + $0xe4] sm:$0xf]
    %v99 = vld [vmem:[%s1 + $0xe8] sm:$0xf]
    %v100 = vld [vmem:[%s1 + $0xec] sm:$0xf]
    %v101 = vld [vmem:[%s1 + $0xf0] sm:$0xf]
    %v102 = vld [vmem:[%s1 + $0xf4] sm:$0xf]
    %v103 = vld [vmem:[%s1 + $0xf8] sm:$0xf]
    %v104 = vld [vmem:[%s1 + $0xfc] sm:$0xf]
    %v105 = vld [vmem:[%s1 + $0x100] sm:$0xf]
    %v106 = vld [vmem:[%s1 + $0x104] sm:$0xf]
    %v107 = vld [vmem:[%s1 + $0x108] sm:$0xf]
    %v108 = vld [vmem:[%s1 + $0x10c] sm:$0xf]
    %v109 = vld [vmem:[%s1 + $0x110] sm:$0xf]
    %v110 = vld [vmem:[%s1 + $0x114] sm:$0xf]
    %v111 = vld [vmem:[%s1 + $0x118] sm:$0xf]
    %v112 = vld [vmem:[%s1 + $0x11c] sm:$0xf]
    %v113 = vld [vmem:[%s1 + $0x120] sm:$0xf]
    %v114 = vld [vmem:[%s1 + $0x124] sm:$0xf]
    %v115 = vld [vmem:[%s1 + $0x128] sm:$0xf]
    %v116 = vld [vmem:[%s1 + $0x12c] sm:$0xf]
    %v117 = vld [vmem:[%s1 + $0x130] sm:$0xf]
    %v118 = vld [vmem:[%s1 + $0x134] sm:$0xf]
    %v119 = vld [vmem:[%s1 + $0x138] sm:$0xf]
    %v120 = vld [vmem:[%s1 + $0x13c] sm:$0xf]
    %v121 = vld [vmem:[%s1 + $0x140] sm:$0xf]
    %v122 = vld [vmem:[%s1 + $0x144] sm:$0xf]
    %v123 = vld [vmem:[%s1 + $0x148] sm:$0xf]
    %v124 = vld [vmem:[%s1 + $0x14c] sm:$0xf]
    %v125 = vld [vmem:[%s1 + $0x150] sm:$0xf]
    %v126 = vld [vmem:[%s1 + $0x154] sm:$0xf]
    %v127 = vld [vmem:[%s1 + $0x158] sm:$0xf]
    %v128 = vld [vmem:[%s1 + $0x15c] sm:$0xf]
    %v129 = vld [vmem:[%s1 + $0x160] sm:$0xf]
    %v130 = vld [vmem:[%s1 + $0x164] sm:$0xf]
    %v131 = vld [vmem:[%s1 + $0x168] sm:$0xf]
    %v132 = vld [vmem:[%s1 + $0x16c] sm:$0xf]
    %v133 = vld [vmem:[%s1 + $0x170] sm:$0xf]
    %v134 = vld [vmem:[%s1 + $0x174] sm:$0xf]
    %v135 = vld [vmem:[%s1 + $0x178] sm:$0xf]
    %v136 = vld [vmem:[%s1 + $0x17c] sm:$0xf]
    %v137 = vld [vmem:[%s1 + $0x180] sm:$0xf]
    %v138 = vld [vmem:[%s1 + $0x184] sm:$0xf]
    %v139 = vld [vmem:[%s1 + $0x188] sm:$0xf]
    %v140 = vld [vmem:[%s1 + $0x18c] sm:$0xf]
    %v141 = vld [vmem:[%s1 + $0x190] sm:$0xf]
    %v142 = vld [vmem:[%s1 + $0x194] sm:$0xf]
    %v143 = vld [vmem:[%s1 + $0x198] sm:$0xf]
    %v144 = vld [vmem:[%s1 + $0x19c] sm:$0xf]
    %v145 = vld [vmem:[%s1 + $0x1a0] sm:$0xf]
    %v146 = vld [vmem:[%s1 + $0x1a4] sm:$0xf]
    %v147 = vld [vmem:[%s1 + $0x1a8] sm:$0xf]
    %v148 = vld [vmem:[%s1 + $0x1ac] sm:$0xf]
    %v149 = vld [vmem:[%s1 + $0x1b0] sm:$0xf]
    %v150 = vld [vmem:[%s1 + $0x1b4] sm:$0xf]
    %v151 = vld [vmem:[%s1 + $0x1b8] sm:$0xf]
    %v152 = vld [vmem:[%s1 + $0x1bc] sm:$0xf]
    %v153 = vld [vmem:[%s1 + $0x1c0] sm:$0xf]
    %v154 = vld [vmem:[%s1 + $0x1c4] sm:$0xf]
    %v155 = vld [vmem:[%s1 + $0x1c8] sm:$0xf]
    %v156 = vld [vmem:[%s1 + $0x1cc] sm:$0xf]
    %v157 = vld [vmem:[%s1 + $0x1d0] sm:$0xf]
    %v158 = vld [vmem:[%s1 + $0x1d4] sm:$0xf]
    %v159 = vld [vmem:[%s1 + $0x1d8] sm:$0xf]
    %v160 = vld [vmem:[%s1 + $0x1dc] sm:$0xf]
    %v161 = vld [vmem:[%s1 + $0x1e0] sm:$0xf]
    %v162 = vld [vmem:[%s1 + $0x1e4] sm:$0xf]
    %v163 = vld [vmem:[%s1 + $0x1e8] sm:$0xf]
    %v164 = vld [vmem:[%s1 + $0x1ec] sm:$0xf]
    %v165 = vld [vmem:[%s1 + $0x1f0] sm:$0xf]
    %v166 = vld [vmem:[%s1 + $0x1f4] sm:$0xf]
    %v167 = vld [vmem:[%s1 + $0x1f8] sm:$0xf]
    %v168 = vld [vmem:[%s1 + $0x1fc] sm:$0xf]
    %v169 = vld [vmem:[%s2] sm:$0x1]
    %v171 = vperm.slane %v169, 0
    %174 = vst [vmem:[#allocation1] ss:$9 sm:$0xff] %v40
    %v175 = vld [vmem:[#allocation1] sm:$0xff]
    %v176 = vld [vmem:[#allocation1 + $0x9] sm:$0xff]
    %v177 = vld [vmem:[#allocation1 + $0x12] sm:$0xff]
    %v178 = vld [vmem:[#allocation1 + $0x1b] sm:$0xff]
    %v179 = vld [vmem:[#allocation1 + $0x24] sm:$0xff]
    %v180 = vld [vmem:[#allocation1 + $0x2d] sm:$0xff]
    %v181 = vld [vmem:[#allocation1 + $0x36] sm:$0xff]
    %v182 = vld [vmem:[#allocation1 + $0x3f] sm:$0xff]
    %v319 = vunpack.c.l.b16 %v41
    %v320 = vunpack.c.l.b16 %v42
    %v321 = vunpack.c.l.b16 %v43
    %v322 = vunpack.c.l.b16 %v44
    %v323 = vunpack.c.l.b16 %v45
    %v324 = vunpack.c.l.b16 %v46
    %v325 = vunpack.c.l.b16 %v47
    %v326 = vunpack.c.l.b16 %v48
    %v327 = vunpack.c.l.b16 %v49
    %v328 = vunpack.c.l.b16 %v50
    %v329 = vunpack.c.l.b16 %v51
    %v330 = vunpack.c.l.b16 %v52
    %v331 = vunpack.c.l.b16 %v53
    %v332 = vunpack.c.l.b16 %v54
    %v333 = vunpack.c.l.b16 %v55
    %v334 = vunpack.c.l.b16 %v56
    %v335 = vunpack.c.l.b16 %v57
    %v336 = vunpack.c.l.b16 %v58
    %v337 = vunpack.c.l.b16 %v59
    %v338 = vunpack.c.l.b16 %v60
    %v339 = vunpack.c.l.b16 %v61
    %v340 = vunpack.c.l.b16 %v62
    %v341 = vunpack.c.l.b16 %v63
    %v342 = vunpack.c.l.b16 %v64
    %v343 = vunpack.c.l.b16 %v65
    %v344 = vunpack.c.l.b16 %v66
    %v345 = vunpack.c.l.b16 %v67
    %v346 = vunpack.c.l.b16 %v68
    %v347 = vunpack.c.l.b16 %v69
    %v348 = vunpack.c.l.b16 %v70
    %v349 = vunpack.c.l.b16 %v71
    %v350 = vunpack.c.l.b16 %v72
    %v351 = vunpack.c.l.b16 %v73
    %v352 = vunpack.c.l.b16 %v74
    %v353 = vunpack.c.l.b16 %v75
    %v354 = vunpack.c.l.b16 %v76
    %v355 = vunpack.c.l.b16 %v77
    %v356 = vunpack.c.l.b16 %v78
    %v357 = vunpack.c.l.b16 %v79
    %v358 = vunpack.c.l.b16 %v80
    %v359 = vunpack.c.l.b16 %v81
    %v360 = vunpack.c.l.b16 %v82
    %v361 = vunpack.c.l.b16 %v83
    %v362 = vunpack.c.l.b16 %v84
    %v363 = vunpack.c.l.b16 %v85
    %v364 = vunpack.c.l.b16 %v86
    %v365 = vunpack.c.l.b16 %v87
    %v366 = vunpack.c.l.b16 %v88
    %v367 = vunpack.c.l.b16 %v89
    %v368 = vunpack.c.l.b16 %v90
    %v369 = vunpack.c.l.b16 %v91
    %v370 = vunpack.c.l.b16 %v92
    %v371 = vunpack.c.l.b16 %v93
    %v372 = vunpack.c.l.b16 %v94
    %v373 = vunpack.c.l.b16 %v95
    %v374 = vunpack.c.l.b16 %v96
    %v375 = vunpack.c.l.b16 %v97
    %v376 = vunpack.c.l.b16 %v98
    %v377 = vunpack.c.l.b16 %v99
    %v378 = vunpack.c.l.b16 %v100
    %v379 = vunpack.c.l.b16 %v101
    %v380 = vunpack.c.l.b16 %v102
    %v381 = vunpack.c.l.b16 %v103
    %v382 = vunpack.c.l.b16 %v104
    %v383 = vunpack.c.l.b16 %v105
    %v384 = vunpack.c.l.b16 %v106
    %v385 = vunpack.c.l.b16 %v107
    %v386 = vunpack.c.l.b16 %v108
    %v387 = vunpack.c.l.b16 %v109
    %v388 = vunpack.c.l.b16 %v110
    %v389 = vunpack.c.l.b16 %v111
    %v390 = vunpack.c.l.b16 %v112
    %v391 = vunpack.c.l.b16 %v113
    %v392 = vunpack.c.l.b16 %v114
    %v393 = vunpack.c.l.b16 %v115
    %v394 = vunpack.c.l.b16 %v116
    %v395 = vunpack.c.l.b16 %v117
    %v396 = vunpack.c.l.b16 %v118
    %v397 = vunpack.c.l.b16 %v119
    %v398 = vunpack.c.l.b16 %v120
    %v399 = vunpack.c.l.b16 %v121
    %v400 = vunpack.c.l.b16 %v122
    %v401 = vunpack.c.l.b16 %v123
    %v402 = vunpack.c.l.b16 %v124
    %v403 = vunpack.c.l.b16 %v125
    %v404 = vunpack.c.l.b16 %v126
    %v405 = vunpack.c.l.b16 %v127
    %v406 = vunpack.c.l.b16 %v128
    %v407 = vunpack.c.l.b16 %v129
    %v408 = vunpack.c.l.b16 %v130
    %v409 = vunpack.c.l.b16 %v131
    %v410 = vunpack.c.l.b16 %v132
    %v411 = vunpack.c.l.b16 %v133
    %v412 = vunpack.c.l.b16 %v134
    %v413 = vunpack.c.l.b16 %v135
    %v414 = vunpack.c.l.b16 %v136
    %v415 = vunpack.c.l.b16 %v137
    %v416 = vunpack.c.l.b16 %v138
    %v417 = vunpack.c.l.b16 %v139
    %v418 = vunpack.c.l.b16 %v140
    %v419 = vunpack.c.l.b16 %v141
    %v420 = vunpack.c.l.b16 %v142
    %v421 = vunpack.c.l.b16 %v143
    %v422 = vunpack.c.l.b16 %v144
    %v423 = vunpack.c.l.b16 %v145
    %v424 = vunpack.c.l.b16 %v146
    %v425 = vunpack.c.l.b16 %v147
    %v426 = vunpack.c.l.b16 %v148
    %v427 = vunpack.c.l.b16 %v149
    %v428 = vunpack.c.l.b16 %v150
    %v429 = vunpack.c.l.b16 %v151
    %v430 = vunpack.c.l.b16 %v152
    %v431 = vunpack.c.l.b16 %v153
    %v432 = vunpack.c.l.b16 %v154
    %v433 = vunpack.c.l.b16 %v155
    %v434 = vunpack.c.l.b16 %v156
    %v435 = vunpack.c.l.b16 %v157
    %v436 = vunpack.c.l.b16 %v158
    %v437 = vunpack.c.l.b16 %v159
    %v438 = vunpack.c.l.b16 %v160
    %v439 = vunpack.c.l.b16 %v161
    %v440 = vunpack.c.l.b16 %v162
    %v441 = vunpack.c.l.b16 %v163
    %v442 = vunpack.c.l.b16 %v164
    %v443 = vunpack.c.l.b16 %v165
    %v444 = vunpack.c.l.b16 %v166
    %v445 = vunpack.c.l.b16 %v167
    %v446 = vunpack.c.l.b16 %v168
    %v447 = vpack.c.b16 %v320, %v319
    %v448 = vpack.c.b16 %v322, %v321
    %v449 = vpack.c.b16 %v324, %v323
    %v450 = vpack.c.b16 %v326, %v325
    %v451 = vpack.c.b16 %v328, %v327
    %v452 = vpack.c.b16 %v330, %v329
    %v453 = vpack.c.b16 %v332, %v331
    %v454 = vpack.c.b16 %v334, %v333
    %v455 = vpack.c.b16 %v336, %v335
    %v456 = vpack.c.b16 %v338, %v337
    %v457 = vpack.c.b16 %v340, %v339
    %v458 = vpack.c.b16 %v342, %v341
    %v459 = vpack.c.b16 %v344, %v343
    %v460 = vpack.c.b16 %v346, %v345
    %v461 = vpack.c.b16 %v348, %v347
    %v462 = vpack.c.b16 %v350, %v349
    %v463 = vpack.c.b16 %v352, %v351
    %v464 = vpack.c.b16 %v354, %v353
    %v465 = vpack.c.b16 %v356, %v355
    %v466 = vpack.c.b16 %v358, %v357
    %v467 = vpack.c.b16 %v360, %v359
    %v468 = vpack.c.b16 %v362, %v361
    %v469 = vpack.c.b16 %v364, %v363
    %v470 = vpack.c.b16 %v366, %v365
    %v471 = vpack.c.b16 %v368, %v367
    %v472 = vpack.c.b16 %v370, %v369
    %v473 = vpack.c.b16 %v372, %v371
    %v474 = vpack.c.b16 %v374, %v373
    %v475 = vpack.c.b16 %v376, %v375
    %v476 = vpack.c.b16 %v378, %v377
    %v477 = vpack.c.b16 %v380, %v379
    %v478 = vpack.c.b16 %v382, %v381
    %v479 = vpack.c.b16 %v384, %v383
    %v480 = vpack.c.b16 %v386, %v385
    %v481 = vpack.c.b16 %v388, %v387
    %v482 = vpack.c.b16 %v390, %v389
    %v483 = vpack.c.b16 %v392, %v391
    %v484 = vpack.c.b16 %v394, %v393
    %v485 = vpack.c.b16 %v396, %v395
    %v486 = vpack.c.b16 %v398, %v397
    %v487 = vpack.c.b16 %v400, %v399
    %v488 = vpack.c.b16 %v402, %v401
    %v489 = vpack.c.b16 %v404, %v403
    %v490 = vpack.c.b16 %v406, %v405
    %v491 = vpack.c.b16 %v408, %v407
    %v492 = vpack.c.b16 %v410, %v409
    %v493 = vpack.c.b16 %v412, %v411
    %v494 = vpack.c.b16 %v414, %v413
    %v495 = vpack.c.b16 %v416, %v415
    %v496 = vpack.c.b16 %v418, %v417
    %v497 = vpack.c.b16 %v420, %v419
    %v498 = vpack.c.b16 %v422, %v421
    %v499 = vpack.c.b16 %v424, %v423
    %v500 = vpack.c.b16 %v426, %v425
    %v501 = vpack.c.b16 %v428, %v427
    %v502 = vpack.c.b16 %v430, %v429
    %v503 = vpack.c.b16 %v432, %v431
    %v504 = vpack.c.b16 %v434, %v433
    %v505 = vpack.c.b16 %v436, %v435
    %v506 = vpack.c.b16 %v438, %v437
    %v507 = vpack.c.b16 %v440, %v439
    %v508 = vpack.c.b16 %v442, %v441
    %v509 = vpack.c.b16 %v444, %v443
    %v510 = vpack.c.b16 %v446, %v445
    %575 = vmatpush.bf16.msra.mxu0 %v454
    %576 = vmatpush.bf16.msra.mxu0 %v453
    %577 = vmatpush.bf16.msra.mxu0 %v452
    %578 = vmatpush.bf16.msra.mxu0 %v451
    %579 = vmatpush.bf16.msra.mxu0 %v450
    %580 = vmatpush.bf16.msra.mxu0 %v449
    %581 = vmatpush.bf16.msra.mxu0 %v448
    %582 = vmatpush.bf16.msra.mxu0 %v447
    %583 = vmatmul.bf16.gmra.mxu0 %v175
    %v584 = vpop.f32.mrf.mxu0
    %v585 = vadd.f32 %v171, %v584
    %v586 = vpop.f32.mrf.mxu0
    %587 = vdwg.mxu0
    %588 = vmatpush.bf16.msra.mxu0 %v462
    %589 = vmatpush.bf16.msra.mxu0 %v461
    %590 = vmatpush.bf16.msra.mxu0 %v460
    %591 = vmatpush.bf16.msra.mxu0 %v459
    %592 = vmatpush.bf16.msra.mxu0 %v458
    %593 = vmatpush.bf16.msra.mxu0 %v457
    %594 = vmatpush.bf16.msra.mxu0 %v456
    %595 = vmatpush.bf16.msra.mxu0 %v455
    %596 = vmatmul.bf16.gmra.mxu0 %v176
    %v597 = vpop.f32.mrf.mxu0
    %v598 = vadd.f32 %v585, %v597
    %v599 = vpop.f32.mrf.mxu0
    %600 = vdwg.mxu0
    %601 = vmatpush.bf16.msra.mxu0 %v470
    %602 = vmatpush.bf16.msra.mxu0 %v469
    %603 = vmatpush.bf16.msra.mxu0 %v468
    %604 = vmatpush.bf16.msra.mxu0 %v467
    %605 = vmatpush.bf16.msra.mxu0 %v466
    %606 = vmatpush.bf16.msra.mxu0 %v465
    %607 = vmatpush.bf16.msra.mxu0 %v464
    %608 = vmatpush.bf16.msra.mxu0 %v463
    %609 = vmatmul.bf16.gmra.mxu0 %v177
    %v610 = vpop.f32.mrf.mxu0
    %v611 = vadd.f32 %v598, %v610
    %v612 = vpop.f32.mrf.mxu0
    %613 = vdwg.mxu0
    %614 = vmatpush.bf16.msra.mxu0 %v478
    %615 = vmatpush.bf16.msra.mxu0 %v477
    %616 = vmatpush.bf16.msra.mxu0 %v476
    %617 = vmatpush.bf16.msra.mxu0 %v475
    %618 = vmatpush.bf16.msra.mxu0 %v474
    %619 = vmatpush.bf16.msra.mxu0 %v473
    %620 = vmatpush.bf16.msra.mxu0 %v472
    %621 = vmatpush.bf16.msra.mxu0 %v471
    %622 = vmatmul.bf16.gmra.mxu0 %v178
    %v623 = vpop.f32.mrf.mxu0
    %v624 = vadd.f32 %v611, %v623
    %v625 = vpop.f32.mrf.mxu0
    %626 = vdwg.mxu0
    %627 = vmatpush.bf16.msra.mxu0 %v486
    %628 = vmatpush.bf16.msra.mxu0 %v485
    %629 = vmatpush.bf16.msra.mxu0 %v484
    %630 = vmatpush.bf16.msra.mxu0 %v483
    %631 = vmatpush.bf16.msra.mxu0 %v482
    %632 = vmatpush.bf16.msra.mxu0 %v481
    %633 = vmatpush.bf16.msra.mxu0 %v480
    %634 = vmatpush.bf16.msra.mxu0 %v479
    %635 = vmatmul.bf16.gmra.mxu0 %v179
    %v636 = vpop.f32.mrf.mxu0
    %v637 = vadd.f32 %v624, %v636
    %v638 = vpop.f32.mrf.mxu0
    %639 = vdwg.mxu0
    %640 = vmatpush.bf16.msra.mxu0 %v494
    %641 = vmatpush.bf16.msra.mxu0 %v493
    %642 = vmatpush.bf16.msra.mxu0 %v492
    %643 = vmatpush.bf16.msra.mxu0 %v491
    %644 = vmatpush.bf16.msra.mxu0 %v490
    %645 = vmatpush.bf16.msra.mxu0 %v489
    %646 = vmatpush.bf16.msra.mxu0 %v488
    %647 = vmatpush.bf16.msra.mxu0 %v487
    %648 = vmatmul.bf16.gmra.mxu0 %v180
    %v649 = vpop.f32.mrf.mxu0
    %v650 = vadd.f32 %v637, %v649
    %v651 = vpop.f32.mrf.mxu0
    %652 = vdwg.mxu0
    %653 = vmatpush.bf16.msra.mxu0 %v502
    %654 = vmatpush.bf16.msra.mxu0 %v501
    %655 = vmatpush.bf16.msra.mxu0 %v500
    %656 = vmatpush.bf16.msra.mxu0 %v499
    %657 = vmatpush.bf16.msra.mxu0 %v498
    %658 = vmatpush.bf16.msra.mxu0 %v497
    %659 = vmatpush.bf16.msra.mxu0 %v496
    %660 = vmatpush.bf16.msra.mxu0 %v495
    %661 = vmatmul.bf16.gmra.mxu0 %v181
    %v662 = vpop.f32.mrf.mxu0
    %v663 = vadd.f32 %v650, %v662
    %v664 = vpop.f32.mrf.mxu0
    %665 = vdwg.mxu0
    %666 = vmatpush.bf16.msra.mxu0 %v510
    %667 = vmatpush.bf16.msra.mxu0 %v509
    %668 = vmatpush.bf16.msra.mxu0 %v508
    %669 = vmatpush.bf16.msra.mxu0 %v507
    %670 = vmatpush.bf16.msra.mxu0 %v506
    %671 = vmatpush.bf16.msra.mxu0 %v505
    %672 = vmatpush.bf16.msra.mxu0 %v504
    %673 = vmatpush.bf16.msra.mxu0 %v503
    %674 = vmatmul.bf16.gmra.mxu0 %v182
    %v675 = vpop.f32.mrf.mxu0
    %v676 = vadd.f32 %v663, %v675
    %v677 = vpop.f32.mrf.mxu0
    %678 = vdwg.mxu0
    %679 = vst [vmem:[#allocation5] sm:$0x3] %v676
    %v680 = vld [vmem:[#allocation2] sm:$0xff]
    %v681 = vld [vmem:[#allocation2 + $0x8] sm:$0xff]
    %v682 = vld [vmem:[#allocation2 + $0x10] sm:$0xff]
    %v683 = vld [vmem:[#allocation2 + $0x18] sm:$0xff]
    %v684 = vld [vmem:[#allocation2 + $0x20] sm:$0xff]
    %v685 = vld [vmem:[#allocation2 + $0x28] sm:$0xff]
    %v686 = vld [vmem:[#allocation2 + $0x30] sm:$0xff]
    %v687 = vld [vmem:[#allocation2 + $0x38] sm:$0xff]
    %v688 = vld [vmem:[#allocation2 + $0x40] sm:$0xff]
    %v689 = vld [vmem:[#allocation2 + $0x48] sm:$0xff]
    %v690 = vld [vmem:[#allocation2 + $0x50] sm:$0xff]
    %v691 = vld [vmem:[#allocation2 + $0x58] sm:$0xff]
    %v692 = vld [vmem:[#allocation2 + $0x60] sm:$0xff]
    %v693 = vld [vmem:[#allocation2 + $0x68] sm:$0xff]
    %v694 = vld [vmem:[#allocation2 + $0x70] sm:$0xff]
    %v695 = vld [vmem:[#allocation2 + $0x78] sm:$0xff]
    %v696 = vld [vmem:[%s4] sm:$0x1]
    %v698 = vperm.slane %v696, 0
    %700 = vmatpush.msra.mxu0 %v695
    %701 = vmatpush.msra.mxu0 %v694
    %702 = vmatpush.msra.mxu0 %v693
    %703 = vmatpush.msra.mxu0 %v692
    %704 = vmatpush.msra.mxu0 %v691
    %705 = vmatpush.msra.mxu0 %v690
    %706 = vmatpush.msra.mxu0 %v689
    %707 = vmatpush.msra.mxu0 %v688
    %708 = vmatpush.msra.mxu0 %v687
    %709 = vmatpush.msra.mxu0 %v686
    %710 = vmatpush.msra.mxu0 %v685
    %711 = vmatpush.msra.mxu0 %v684
    %712 = vmatpush.msra.mxu0 %v683
    %713 = vmatpush.msra.mxu0 %v682
    %714 = vmatpush.msra.mxu0 %v681
    %715 = vmatpush.msra.mxu0 %v680
    %716 = vmatmul.f32.gmra.mxu0 %v676
    %v717 = vpop.f32.mrf.mxu0
    %v718 = vadd.f32 %v698, %v717
    %719 = vdwg.mxu0
    %720 = vst [vmem:[#allocation6] sm:$0x3] %v718
    // Predicated region
    $region26: #{_lambda_.1} parent=1 // pred_check
      _
    $region27: #{_lambda_.1} parent=1 // pred_check_branch
      %722 = sbr.rel (0) target = $region29
    $region28: #{_lambda_.1} parent=1 // pred_region
      %724 = vsyncadd [#allocation4], 0
      %s726 = sshll.u32 [#allocation5], 4
      %s727 = int_to_ptr.vmem [resolvable:$true] %s726
      %s728 = sshll.u32 %s5, 4
      %s729 = int_to_ptr.hbm [resolvable:$true] %s728
      %731 = dma.vmem_to_hbm [thread:$0]  %s727, 32, %s729, [#allocation4]
    $region29: #{_lambda_.1} parent=1 // pred_fallthru
      _
    // Predicated region
    $region30: #{_lambda_.1} parent=1 // pred_check
      _
    $region31: #{_lambda_.1} parent=1 // pred_check_branch
      %733 = sbr.rel (0) target = $region33
    $region32: #{_lambda_.1} parent=1 // pred_region
      %735 = vsyncadd [#allocation7], 0
      %s737 = sshll.u32 [#allocation6], 4
      %s738 = int_to_ptr.vmem [resolvable:$true] %s737
      %s739 = sshll.u32 %s6, 4
      %s740 = int_to_ptr.hbm [resolvable:$true] %s739
      %742 = dma.vmem_to_hbm [thread:$0]  %s738, 32, %s740, [#allocation7]
    $region33: #{_lambda_.1} parent=1 // pred_fallthru
      _
    // Predicated region
    $region34: #{_lambda_.1} parent=1 // pred_check
      _
    $region35: #{_lambda_.1} parent=1 // pred_check_branch
      %744 = sbr.rel (0) target = $region37
    $region36: #{_lambda_.1} parent=1 // pred_region
      %746 = dma.done [#allocation4], 32
    $region37: #{_lambda_.1} parent=1 // pred_fallthru
      _
    // Predicated region
    $region38: #{_lambda_.1} parent=1 // pred_check
      _
    $region39: #{_lambda_.1} parent=1 // pred_check_branch
      %748 = sbr.rel (0) target = $region41
    $region40: #{_lambda_.1} parent=1 // pred_region
      %750 = dma.done [#allocation7], 32
    $region41: #{_lambda_.1} parent=1 // pred_fallthru
      _
    %751 = vsyncpa [#allocation3], 1
    %752 = vsyncpa [#allocation4], 1
    %753 = vsyncpa [#allocation7], 1

</llo_original>
